<compile_context>
chip_gen: v6e
topology: v6e:2x2x1
jax: 0.10.0
libtpu: 0.0.40
codegen_flags: <defaults>
</compile_context>

<pallas_src>
import functools

import jax
import jax.numpy as jnp
from jax import lax
from jax.experimental import pallas as pl
from jax.experimental.pallas import tpu as pltpu


def _round_up(v, m):
    return (v + m - 1) // m * m


def _pam_kernel(x_ref,       # VMEM (1, C, tn)      compute dtype
                w_ref,       # VMEM (ctot, C)       compute dtype: rows [Wq | Wk | Wv;1-proxy]
                b_ref,       # VMEM (ctot, 1)       f32 stacked bias (same row layout)
                gamma_ref,   # SMEM (1,)            f32
                out_ref,     # VMEM (1, C, tn)      compute dtype
                stats_acc,   # VMEM (c_ext, cq_ext) f32 fused statistics accumulator
                ext_buf,     # VMEM (cq_ext, tn)    f32 [Kn|Qn ; ones ; 0] staging buffer
                *, n_valid, eps, cq_pad, c_pad, needs_mask):
    cq_ext = cq_pad + 8
    p = pl.program_id(1)      # 0 = accumulate global K/V statistics, 1 = apply
    t = pl.program_id(2)      # spatial (lane) tile index
    cd = x_ref.dtype          # compute dtype -> MXU operand dtype (accumulation is f32)
    tn = x_ref.shape[2]

    @pl.when(jnp.logical_and(p == 0, t == 0))
    def _init():
        stats_acc[...] = jnp.zeros_like(stats_acc)
        # The pass-0 output block index is pinned to (b, 0, 0) and is only given its
        # real value by pass-1 t=0 (which maps to the same block and fully overwrites
        # it before the first index change). Write a benign placeholder so even an
        # early flush never leaks uninitialized VMEM to HBM.
        out_ref[0] = x_ref[0]

    def _stage_ext(top_rows, ones_row):
        """ext_buf <- [top_rows (cq_pad rows) ; ones_row ; zeros (7 rows)]."""
        ext_buf[:cq_pad, :] = top_rows
        row_id = lax.broadcasted_iota(jnp.int32, (8, tn), 0)
        ext_buf[cq_pad:, :] = jnp.where(row_id == 0, ones_row, jnp.float32(0.0))

    @pl.when(p == 0)
    def _accumulate():
        x = x_ref[0]                                                     # (C, tn) cd
        # One stacked MXU stream produces K and V_ext for this tile; V_ext carries an
        # all-ones proxy row at local index c_pad (zero weight row, bias 1).
        kvp = jnp.dot(w_ref[cq_pad:, :], x,
                      preferred_element_type=jnp.float32) + b_ref[cq_pad:, :]
        k = kvp[:cq_pad]                                                 # (cq_pad, tn) f32
        v_ext = kvp[cq_pad:]                                             # (c_ext, tn)  f32
        # l2-normalize each spatial column of K over channels (EUP rsqrt).
        # TODO(synk): no eps inside the rsqrt, to stay faithful to the torch module
        # (an all-zero column gives inf/nan there too).
        kn = k * lax.rsqrt(jnp.sum(k * k, axis=0, keepdims=True))        # (cq_pad, tn)
        ones_row = jnp.ones((1, tn), jnp.float32)
        if needs_mask:
            col = t * tn + lax.broadcasted_iota(jnp.int32, (1, tn), 1)
            valid = col < n_valid
            kn = jnp.where(valid, kn, 0.0)        # also kills rsqrt NaN on padded cols
            ones_row = jnp.where(valid, ones_row, 0.0)
        _stage_ext(kn, ones_row)
        # Single fused MXU contraction over the spatial tile (cd operands, f32 acc):
        #   rows [0:C)  x cols [0:cq_pad) -> kv   = V . Kn^T
        #   row  c_pad  x cols [0:cq_pad) -> krs  = row-sum(Kn)
        #   rows [0:C)  x col  cq_pad     -> vsum = row-sum(V)
        #   (c_pad, cq_pad)               -> count = N
        stats_acc[...] += lax.dot_general(
            v_ext.astype(cd), ext_buf[...].astype(cd),
            (((1,), (1,)), ((), ())), preferred_element_type=jnp.float32)

    @pl.when(jnp.logical_and(p == 0, t == pl.num_programs(2) - 1))
    def _fold_eps():
        # tailor denominator uses (row-sum(Kn) + eps); fold eps in once per batch,
        # only into the krs columns so the N count cell stays exact.
        col_id = lax.broadcasted_iota(jnp.int32, (8, cq_ext), 1)
        eps_blk = jnp.where(col_id < cq_pad, jnp.float32(eps), jnp.float32(0.0))
        stats_acc[c_pad:c_pad + 8, :] = stats_acc[c_pad:c_pad + 8, :] + eps_blk

    @pl.when(p == 1)
    def _apply():
        x = x_ref[0]                                                     # (C, tn) cd
        q = jnp.dot(w_ref[:cq_pad, :], x,
                    preferred_element_type=jnp.float32) + b_ref[:cq_pad, :]
        qn = q * lax.rsqrt(jnp.sum(q * q, axis=0, keepdims=True))        # (cq_pad, tn)
        _stage_ext(qn, jnp.ones((1, tn), jnp.float32))
        # One fused MXU matmul:
        #   rows [0:C)  -> vsum + kv @ Qn         (weight_value numerator)
        #   row  c_pad  -> N + (krs + eps) @ Qn   (tailor denominator)
        fused = jnp.dot(stats_acc[...].astype(cd), ext_buf[...].astype(cd),
                        preferred_element_type=jnp.float32)              # (c_ext, tn)
        tailor = pl.reciprocal(fused[c_pad:c_pad + 1, :], approx=False)  # (1, tn)
        weight_value = fused[:x.shape[0]] * tailor                       # (C, tn) f32
        # Residual add in the compute dtype (no f32 upcast temp of x).
        out_ref[0] = x + (gamma_ref[0] * weight_value).astype(x.dtype)


def pam_forward(x, wq, bq, wk, bk, wv, bv, gamma, *, eps=1e-6,
                tile_n=1024, compute_dtype=jnp.float32):
    """x: (B, C, W, H) NCHW.  wq/wk: (C//scale, C[,1,1]), wv: (C, C[,1,1]),
    b*: matching biases, gamma: scalar.  Returns (B, C, W, H) in compute_dtype."""
    B, C, W, H = x.shape
    if W != H:
        # Same view-aliasing as the torch module; only square inputs are well defined.
        raise ValueError("PAM_Module forward requires W == H (torch view aliasing).")
    N = W * H
    Cq = wq.shape[0]
    cq_pad = _round_up(Cq, 8)
    c_pad = _round_up(C, 8)
    cq_ext = cq_pad + 8
    c_ext = c_pad + 8
    ctot = 2 * cq_pad + c_ext

    # Stacked, zero-padded 1x1-conv weights/biases: rows [Wq | Wk | Wv ; ones-proxy].
    w_stk = jnp.zeros((ctot, C), jnp.float32)
    w_stk = w_stk.at[:Cq].set(jnp.asarray(wq, jnp.float32).reshape(Cq, C))
    w_stk = w_stk.at[cq_pad:cq_pad + Cq].set(jnp.asarray(wk, jnp.float32).reshape(Cq, C))
    w_stk = w_stk.at[2 * cq_pad:2 * cq_pad + C].set(jnp.asarray(wv, jnp.float32).reshape(C, C))
    b_stk = jnp.zeros((ctot, 1), jnp.float32)
    b_stk = b_stk.at[:Cq].set(jnp.asarray(bq, jnp.float32).reshape(Cq, 1))
    b_stk = b_stk.at[cq_pad:cq_pad + Cq].set(jnp.asarray(bk, jnp.float32).reshape(Cq, 1))
    b_stk = b_stk.at[2 * cq_pad:2 * cq_pad + C].set(jnp.asarray(bv, jnp.float32).reshape(C, 1))
    # Ones-proxy row appended to the V segment: zero weight row, bias 1 -> projects to 1.
    b_stk = b_stk.at[2 * cq_pad + c_pad, 0].set(1.0)

    # Lane-dense spatial tiling: pad N up to a multiple of the (>=128) tile and mask the
    # padded columns inside pass 0.  Never collapses to tn=N or tiny tiles.
    tn = min(_round_up(tile_n, 128), _round_up(N, 128))
    n_pad = _round_up(N, tn)
    n_tiles = n_pad // tn
    needs_mask = (n_pad != N)

    x_flat = x.reshape(B, C, N).astype(compute_dtype)
    if needs_mask:
        x_flat = jnp.pad(x_flat, ((0, 0), (0, 0), (0, n_pad - N)))
    w_stk = w_stk.astype(compute_dtype)
    gamma_arr = jnp.asarray(gamma, jnp.float32).reshape(1)

    # Size-derived VMEM limit (double-buffered x/out blocks, weights, scratch, f32
    # intermediates) with 1.5x margin, capped at 64 MiB so defaults also fit v7x.
    isz = jnp.dtype(compute_dtype).itemsize
    est = (4 * C * tn * isz                                   # x + out, double-buffered
           + 2 * ctot * (C * isz + 4)                         # stacked weight + bias
           + (c_ext * max(cq_ext, 128) + cq_ext * tn) * 4     # scratch buffers
           + (ctot + 2 * (c_ext + cq_ext)) * tn * 4)          # f32 intermediates
    vmem_limit = int(min(64 * 1024 * 1024, max(32 * 1024 * 1024, (3 * est) // 2)))

    kernel = functools.partial(_pam_kernel, n_valid=N, eps=eps,
                               cq_pad=cq_pad, c_pad=c_pad, needs_mask=needs_mask)

    out_flat = pl.pallas_call(
        kernel,
        out_shape=jax.ShapeDtypeStruct((B, C, n_pad), compute_dtype),
        grid=(B, 2, n_tiles),   # (batch, pass: 0=accumulate / 1=apply, spatial tile)
        in_specs=[
            pl.BlockSpec((1, C, tn), lambda b, p, t: (b, 0, t)),    # x tile (both passes)
            pl.BlockSpec((ctot, C), lambda b, p, t: (0, 0)),        # stacked [Wq;Wk;Wv;1]
            pl.BlockSpec((ctot, 1), lambda b, p, t: (0, 0)),        # stacked bias
            pl.BlockSpec(memory_space=pltpu.MemorySpace.SMEM),      # gamma scalar
        ],
        # Pass 0 pins the output index to tile 0 (only a placeholder write at t==0);
        # pass 1 walks the tiles and writes lane-dense blocks (tn multiple of 128).
        out_specs=pl.BlockSpec((1, C, tn), lambda b, p, t: (b, 0, t * p)),
        scratch_shapes=[
            pltpu.VMEM((c_ext, cq_ext), jnp.float32),   # fused [kv | vsum ; krs | N]
            pltpu.VMEM((cq_ext, tn), jnp.float32),      # [Kn|Qn ; ones ; 0] staging
        ],
        compiler_params=pltpu.CompilerParams(
            # TODO(synk): when B == 1 (v7x: 2 TensorCores) split the spatial tiles into
            # per-core halves with partial accumulators + a cross-core combine.
            dimension_semantics=("parallel", "arbitrary", "arbitrary"),
            vmem_limit_bytes=vmem_limit),
    )(x_flat, w_stk, b_stk, gamma_arr)

    if needs_mask:
        out_flat = out_flat[:, :, :N]
    # Matches torch's weight_value.view(B, C, H, W) + x (requires W == H).
    return out_flat.reshape(B, C, W, H)


def pam_reference(x, wq, bq, wk, bk, wv, bv, gamma, eps=1e-6):
    """Pure-JAX reference mirroring the PyTorch forward pass."""
    B, C, W, H = x.shape
    N = W * H
    xf = x.reshape(B, C, N)
    Q = jnp.einsum('oc,bcn->bon', wq, xf) + bq[None]
    K = jnp.einsum('oc,bcn->bon', wk, xf) + bk[None]
    V = jnp.einsum('oc,bcn->bon', wv, xf) + bv[None]
    qn = Q / jnp.linalg.norm(Q, axis=1, keepdims=True)
    kn = K / jnp.linalg.norm(K, axis=1, keepdims=True)
    ksum = jnp.sum(kn, axis=-1) + eps                             # (B, Cq)
    tailor = 1.0 / (N + jnp.einsum('bcn,bc->bn', qn, ksum))       # (B, N)
    vsum = jnp.sum(V, axis=-1)                                    # (B, C)
    matrix = jnp.einsum('bmn,bcn->bmc', kn, V)                    # (B, Cq, C)
    attn = jnp.einsum('bmn,bmc->bcn', qn, matrix)                 # (B, C, N)
    wvout = (vsum[:, :, None] + attn) * tailor[:, None, :]
    return (xf + gamma * wvout).reshape(B, C, W, H)


if __name__ == "__main__":
    B, C, W, H = 2, 16, 16, 16        # in_places=16, scale=8 -> Cq=2
    scale = 8
    Cq = C // scale

    key = jax.random.PRNGKey(0)
    kx, kq, kbq, kk, kbk, kv_, kbv = jax.random.split(key, 7)

    x = jax.random.normal(kx, (B, C, W, H), dtype=jnp.float32)

    # Conv2d(kernel_size=1) weights flattened to (C_out, C_in); deterministic init.
    wq = jax.random.normal(kq, (Cq, C), dtype=jnp.float32) * 0.1
    bq = jax.random.normal(kbq, (Cq, 1), dtype=jnp.float32) * 0.1
    wk = jax.random.normal(kk, (Cq, C), dtype=jnp.float32) * 0.1
    bk = jax.random.normal(kbk, (Cq, 1), dtype=jnp.float32) * 0.1
    wv = jax.random.normal(kv_, (C, C), dtype=jnp.float32) * 0.1
    bv = jax.random.normal(kbv, (C, 1), dtype=jnp.float32) * 0.1
    # Module init sets gamma = 0; use a nonzero value so the attention path is exercised.
    gamma = 0.5

    ref = pam_reference(x, wq, bq, wk, bk, wv, bv, gamma)

    # f32 path; tile_n=128 so the two-pass spatial tiling is exercised (grid = (2, 2, 2)).
    out = pam_forward(x, wq, bq, wk, bk, wv, bv, gamma,
                      tile_n=128, compute_dtype=jnp.float32)
    out = jax.block_until_ready(out)
    assert out.shape == (B, C, W, H)
    assert jnp.allclose(out, ref, rtol=2e-3, atol=2e-3), "f32 kernel mismatch vs reference"

    # bf16 I/O + bf16 MXU operands for projection/stats/attention dots (f32 accumulate).
    out_bf16 = pam_forward(x, wq, bq, wk, bk, wv, bv, gamma,
                           tile_n=128, compute_dtype=jnp.bfloat16)
    out_bf16 = jax.block_until_ready(out_bf16)
    assert jnp.allclose(out_bf16.astype(jnp.float32), ref, rtol=5e-2, atol=5e-2), \
        "bf16 kernel mismatch vs reference"

    # Non-divisor spatial size (N = 144): exercises the pad-to-tile + mask path.
    W2 = H2 = 12
    x2 = jax.random.normal(kx, (B, C, W2, H2), dtype=jnp.float32)
    ref2 = pam_reference(x2, wq, bq, wk, bk, wv, bv, gamma)
    out2 = pam_forward(x2, wq, bq, wk, bk, wv, bv, gamma,
                       tile_n=128, compute_dtype=jnp.float32)
    out2 = jax.block_until_ready(out2)
    assert out2.shape == (B, C, W2, H2)
    assert jnp.allclose(out2, ref2, rtol=2e-3, atol=2e-3), "masked-N kernel mismatch"

    print("KERNEL_OK")
</pallas_src>

<mosaic_0001>
module attributes {stable_mosaic.version = 11 : i64} {
  func.func @_pam_kernel(%arg0: i32, %arg1: i32, %arg2: i32, %arg3: memref<1x16x128xf32, #tpu.memory_space<vmem>>, %arg4: memref<40x16xf32, #tpu.memory_space<vmem>>, %arg5: memref<40x1xf32, #tpu.memory_space<vmem>>, %arg6: memref<1xf32, #tpu.memory_space<smem>>, %arg7: memref<1x16x128xf32, #tpu.memory_space<vmem>>, %arg8: memref<24x16xf32, #tpu.memory_space<vmem>>, %arg9: memref<16x128xf32, #tpu.memory_space<vmem>>) attributes {dimension_semantics = [#tpu.dimension_semantics<parallel>, #tpu.dimension_semantics<arbitrary>, #tpu.dimension_semantics<arbitrary>], iteration_bounds = array<i64: 2, 2, 2>, scalar_prefetch = 0 : i64, scratch_operands = 2 : i64, tpu.core_type = #tpu.core_type<tc>, window_params = [{transform_indices = @transform_0, window_bounds = array<i64: 1, 16, 128>}, {pipeline_mode = #tpu.pipeline_mode<synchronous>, transform_indices = @transform_1, window_bounds = array<i64: 40, 16>}, {pipeline_mode = #tpu.pipeline_mode<synchronous>, transform_indices = @transform_2, window_bounds = array<i64: 40, 1>}, {transform_indices = @transform_3, window_bounds = array<i64: 1>}, {transform_indices = @transform_4, window_bounds = array<i64: 1, 16, 128>}]} {
    %c0_i32 = arith.constant 0 : i32
    %0 = arith.cmpi eq, %arg1, %c0_i32 : i32
    %c0_i32_0 = arith.constant 0 : i32
    %1 = arith.cmpi eq, %arg2, %c0_i32_0 : i32
    %2 = arith.andi %0, %1 : i1
    %3 = arith.extui %2 : i1 to i32
    %c0_i32_1 = arith.constant 0 : i32
    %4 = arith.cmpi ne, %3, %c0_i32_1 : i32
    scf.if %4 {
      %cst = arith.constant 0.000000e+00 : f32
      %16 = vector.broadcast %cst : f32 to vector<24x16xf32>
      %c0 = arith.constant 0 : index
      %c0_8 = arith.constant 0 : index
      %17 = vector.load %arg8[%c0, %c0_8] : memref<24x16xf32, #tpu.memory_space<vmem>>, vector<24x16xf32>
      tpu.vector_store %arg8[%c0, %c0_8], %16 {strides = array<i32>} : memref<24x16xf32, #tpu.memory_space<vmem>>, vector<24x16xf32>,
      %c0_9 = arith.constant 0 : index
      %c0_10 = arith.constant 0 : index
      %c0_11 = arith.constant 0 : index
      %18 = vector.load %arg3[%c0_9, %c0_10, %c0_11] : memref<1x16x128xf32, #tpu.memory_space<vmem>>, vector<1x16x128xf32>
      %19 = vector.shape_cast %18 : vector<1x16x128xf32> to vector<16x128xf32>
      %c0_12 = arith.constant 0 : index
      %c0_13 = arith.constant 0 : index
      %c0_14 = arith.constant 0 : index
      %20 = vector.load %arg7[%c0_12, %c0_13, %c0_14] : memref<1x16x128xf32, #tpu.memory_space<vmem>>, vector<1x16x128xf32>
      %21 = vector.shape_cast %20 : vector<1x16x128xf32> to vector<16x128xf32>
      %22 = vector.shape_cast %19 : vector<16x128xf32> to vector<1x16x128xf32>
      tpu.vector_store %arg7[%c0_12, %c0_13, %c0_14], %22 {strides = array<i32>} : memref<1x16x128xf32, #tpu.memory_space<vmem>>, vector<1x16x128xf32>,
    } else {
    }
    %c0_i32_2 = arith.constant 0 : i32
    %5 = arith.cmpi eq, %arg1, %c0_i32_2 : i32
    %6 = arith.extui %5 : i1 to i32
    %c0_i32_3 = arith.constant 0 : i32
    %7 = arith.cmpi ne, %6, %c0_i32_3 : i32
    scf.if %7 {
      %c0 = arith.constant 0 : index
      %c0_8 = arith.constant 0 : index
      %c0_9 = arith.constant 0 : index
      %16 = vector.load %arg3[%c0, %c0_8, %c0_9] : memref<1x16x128xf32, #tpu.memory_space<vmem>>, vector<1x16x128xf32>
      %17 = vector.shape_cast %16 : vector<1x16x128xf32> to vector<16x128xf32>
      %c8 = arith.constant 8 : index
      %c0_10 = arith.constant 0 : index
      %18 = vector.load %arg4[%c8, %c0_10] : memref<40x16xf32, #tpu.memory_space<vmem>>, vector<32x16xf32>
      %cst = arith.constant dense<0.000000e+00> : vector<32x128xf32>
      %19 = tpu.matmul %18, %17, %cst {dimension_numbers = #tpu.dot_dimension_numbers<[1], [0], [0], [1], [0, 0, 1, 1], [], []>} : vector<32x16xf32>, vector<16x128xf32>, vector<32x128xf32> -> vector<32x128xf32>
      %c8_11 = arith.constant 8 : index
      %c0_12 = arith.constant 0 : index
      %20 = vector.load %arg5[%c8_11, %c0_12] : memref<40x1xf32, #tpu.memory_space<vmem>>, vector<32x1xf32>
      %21 = vector.broadcast %20 : vector<32x1xf32> to vector<32x128xf32>
      %22 = arith.addf %19, %21 : vector<32x128xf32>
      %23 = vector.extract_strided_slice %22 {offsets = [0, 0], sizes = [8, 128], strides = [1, 1]} : vector<32x128xf32> to vector<8x128xf32>
      %24 = vector.extract_strided_slice %22 {offsets = [8, 0], sizes = [24, 128], strides = [1, 1]} : vector<32x128xf32> to vector<24x128xf32>
      %25 = arith.mulf %23, %23 : vector<8x128xf32>
      %cst_13 = arith.constant dense<0.000000e+00> : vector<128xf32>
      %26 = vector.multi_reduction <add>, %25, %cst_13 [0] : vector<8x128xf32> to vector<128xf32>
      %27 = vector.shape_cast %26 : vector<128xf32> to vector<1x128xf32>
      %28 = math.rsqrt %27 : vector<1x128xf32>
      %29 = vector.broadcast %28 : vector<1x128xf32> to vector<8x128xf32>
      %30 = arith.mulf %23, %29 : vector<8x128xf32>
      %cst_14 = arith.constant 1.000000e+00 : f32
      %31 = vector.broadcast %cst_14 : f32 to vector<1x128xf32>
      %c0_15 = arith.constant 0 : index
      %c0_16 = arith.constant 0 : index
      %32 = vector.load %arg9[%c0_15, %c0_16] : memref<16x128xf32, #tpu.memory_space<vmem>>, vector<8x128xf32>
      tpu.vector_store %arg9[%c0_15, %c0_16], %30 {strides = array<i32>} : memref<16x128xf32, #tpu.memory_space<vmem>>, vector<8x128xf32>,
      %33 = tpu.iota {dimensions = array<i32: 0>} : vector<8x128xi32>
      %c0_i32_17 = arith.constant 0 : i32
      %34 = vector.broadcast %c0_i32_17 : i32 to vector<8x128xi32>
      %35 = arith.cmpi eq, %33, %34 : vector<8x128xi32>
      %cst_18 = arith.constant 0.000000e+00 : f32
      %36 = vector.shape_cast %31 : vector<1x128xf32> to vector<1x128xf32>
      %37 = vector.broadcast %36 : vector<1x128xf32> to vector<8x128xf32>
      %38 = vector.broadcast %cst_18 : f32 to vector<8x128xf32>
      %39 = arith.select %35, %37, %38 : vector<8x128xi1>, vector<8x128xf32>
      %c8_19 = arith.constant 8 : index
      %c0_20 = arith.constant 0 : index
      %40 = vector.load %arg9[%c8_19, %c0_20] : memref<16x128xf32, #tpu.memory_space<vmem>>, vector<8x128xf32>
      tpu.vector_store %arg9[%c8_19, %c0_20], %39 {strides = array<i32>} : memref<16x128xf32, #tpu.memory_space<vmem>>, vector<8x128xf32>,
      %c0_21 = arith.constant 0 : index
      %c0_22 = arith.constant 0 : index
      %41 = vector.load %arg8[%c0_21, %c0_22] : memref<24x16xf32, #tpu.memory_space<vmem>>, vector<24x16xf32>
      %c0_23 = arith.constant 0 : index
      %c0_24 = arith.constant 0 : index
      %42 = vector.load %arg9[%c0_23, %c0_24] : memref<16x128xf32, #tpu.memory_space<vmem>>, vector<16x128xf32>
      %cst_25 = arith.constant dense<0.000000e+00> : vector<24x16xf32>
      %43 = tpu.matmul %24, %42, %cst_25 {dimension_numbers = #tpu.dot_dimension_numbers<[1], [1], [0], [0], [0, 0, 1, 0], [], []>} : vector<24x128xf32>, vector<16x128xf32>, vector<24x16xf32> -> vector<24x16xf32>
      %44 = arith.addf %41, %43 : vector<24x16xf32>
      %c0_26 = arith.constant 0 : index
      %c0_27 = arith.constant 0 : index
      %45 = vector.load %arg8[%c0_26, %c0_27] : memref<24x16xf32, #tpu.memory_space<vmem>>, vector<24x16xf32>
      tpu.vector_store %arg8[%c0_26, %c0_27], %44 {strides = array<i32>} : memref<24x16xf32, #tpu.memory_space<vmem>>, vector<24x16xf32>,
    } else {
    }
    %c0_i32_4 = arith.constant 0 : i32
    %8 = arith.cmpi eq, %arg1, %c0_i32_4 : i32
    %c1_i32 = arith.constant 1 : i32
    %9 = arith.cmpi eq, %arg2, %c1_i32 : i32
    %10 = arith.andi %8, %9 : i1
    %11 = arith.extui %10 : i1 to i32
    %c0_i32_5 = arith.constant 0 : i32
    %12 = arith.cmpi ne, %11, %c0_i32_5 : i32
    scf.if %12 {
      %16 = tpu.iota {dimensions = array<i32: 1>} : vector<8x16xi32>
      %c8_i32 = arith.constant 8 : i32
      %17 = vector.broadcast %c8_i32 : i32 to vector<8x16xi32>
      %18 = arith.cmpi slt, %16, %17 : vector<8x16xi32>
      %cst = arith.constant 9.99999997E-7 : f32
      %cst_8 = arith.constant 0.000000e+00 : f32
      %19 = vector.broadcast %cst : f32 to vector<8x16xf32>
      %20 = vector.broadcast %cst_8 : f32 to vector<8x16xf32>
      %21 = arith.select %18, %19, %20 : vector<8x16xi1>, vector<8x16xf32>
      %c16 = arith.constant 16 : index
      %c0 = arith.constant 0 : index
      %22 = vector.load %arg8[%c16, %c0] : memref<24x16xf32, #tpu.memory_space<vmem>>, vector<8x16xf32>
      %23 = arith.addf %22, %21 : vector<8x16xf32>
      %c16_9 = arith.constant 16 : index
      %c0_10 = arith.constant 0 : index
      %24 = vector.load %arg8[%c16_9, %c0_10] : memref<24x16xf32, #tpu.memory_space<vmem>>, vector<8x16xf32>
      tpu.vector_store %arg8[%c16_9, %c0_10], %23 {strides = array<i32>} : memref<24x16xf32, #tpu.memory_space<vmem>>, vector<8x16xf32>,
    } else {
    }
    %c1_i32_6 = arith.constant 1 : i32
    %13 = arith.cmpi eq, %arg1, %c1_i32_6 : i32
    %14 = arith.extui %13 : i1 to i32
    %c0_i32_7 = arith.constant 0 : i32
    %15 = arith.cmpi ne, %14, %c0_i32_7 : i32
    scf.if %15 {
      %c0 = arith.constant 0 : index
      %c0_8 = arith.constant 0 : index
      %c0_9 = arith.constant 0 : index
      %16 = vector.load %arg3[%c0, %c0_8, %c0_9] : memref<1x16x128xf32, #tpu.memory_space<vmem>>, vector<1x16x128xf32>
      %17 = vector.shape_cast %16 : vector<1x16x128xf32> to vector<16x128xf32>
      %c0_10 = arith.constant 0 : index
      %c0_11 = arith.constant 0 : index
      %18 = vector.load %arg4[%c0_10, %c0_11] : memref<40x16xf32, #tpu.memory_space<vmem>>, vector<8x16xf32>
      %cst = arith.constant dense<0.000000e+00> : vector<8x128xf32>
      %19 = tpu.matmul %18, %17, %cst {dimension_numbers = #tpu.dot_dimension_numbers<[1], [0], [0], [1], [0, 0, 1, 1], [], []>} : vector<8x16xf32>, vector<16x128xf32>, vector<8x128xf32> -> vector<8x128xf32>
      %c0_12 = arith.constant 0 : index
      %c0_13 = arith.constant 0 : index
      %20 = vector.load %arg5[%c0_12, %c0_13] : memref<40x1xf32, #tpu.memory_space<vmem>>, vector<8x1xf32>
      %21 = vector.broadcast %20 : vector<8x1xf32> to vector<8x128xf32>
      %22 = arith.addf %19, %21 : vector<8x128xf32>
      %23 = arith.mulf %22, %22 : vector<8x128xf32>
      %cst_14 = arith.constant dense<0.000000e+00> : vector<128xf32>
      %24 = vector.multi_reduction <add>, %23, %cst_14 [0] : vector<8x128xf32> to vector<128xf32>
      %25 = vector.shape_cast %24 : vector<128xf32> to vector<1x128xf32>
      %26 = math.rsqrt %25 : vector<1x128xf32>
      %27 = vector.broadcast %26 : vector<1x128xf32> to vector<8x128xf32>
      %28 = arith.mulf %22, %27 : vector<8x128xf32>
      %cst_15 = arith.constant 1.000000e+00 : f32
      %29 = vector.broadcast %cst_15 : f32 to vector<1x128xf32>
      %c0_16 = arith.constant 0 : index
      %c0_17 = arith.constant 0 : index
      %30 = vector.load %arg9[%c0_16, %c0_17] : memref<16x128xf32, #tpu.memory_space<vmem>>, vector<8x128xf32>
      tpu.vector_store %arg9[%c0_16, %c0_17], %28 {strides = array<i32>} : memref<16x128xf32, #tpu.memory_space<vmem>>, vector<8x128xf32>,
      %31 = tpu.iota {dimensions = array<i32: 0>} : vector<8x128xi32>
      %c0_i32_18 = arith.constant 0 : i32
      %32 = vector.broadcast %c0_i32_18 : i32 to vector<8x128xi32>
      %33 = arith.cmpi eq, %31, %32 : vector<8x128xi32>
      %cst_19 = arith.constant 0.000000e+00 : f32
      %34 = vector.shape_cast %29 : vector<1x128xf32> to vector<1x128xf32>
      %35 = vector.broadcast %34 : vector<1x128xf32> to vector<8x128xf32>
      %36 = vector.broadcast %cst_19 : f32 to vector<8x128xf32>
      %37 = arith.select %33, %35, %36 : vector<8x128xi1>, vector<8x128xf32>
      %c8 = arith.constant 8 : index
      %c0_20 = arith.constant 0 : index
      %38 = vector.load %arg9[%c8, %c0_20] : memref<16x128xf32, #tpu.memory_space<vmem>>, vector<8x128xf32>
      tpu.vector_store %arg9[%c8, %c0_20], %37 {strides = array<i32>} : memref<16x128xf32, #tpu.memory_space<vmem>>, vector<8x128xf32>,
      %c0_21 = arith.constant 0 : index
      %c0_22 = arith.constant 0 : index
      %39 = vector.load %arg8[%c0_21, %c0_22] : memref<24x16xf32, #tpu.memory_space<vmem>>, vector<24x16xf32>
      %c0_23 = arith.constant 0 : index
      %c0_24 = arith.constant 0 : index
      %40 = vector.load %arg9[%c0_23, %c0_24] : memref<16x128xf32, #tpu.memory_space<vmem>>, vector<16x128xf32>
      %cst_25 = arith.constant dense<0.000000e+00> : vector<24x128xf32>
      %41 = tpu.matmul %39, %40, %cst_25 {dimension_numbers = #tpu.dot_dimension_numbers<[1], [0], [0], [1], [0, 0, 1, 1], [], []>} : vector<24x16xf32>, vector<16x128xf32>, vector<24x128xf32> -> vector<24x128xf32>
      %42 = vector.extract_strided_slice %41 {offsets = [16, 0], sizes = [1, 128], strides = [1, 1]} : vector<24x128xf32> to vector<1x128xf32>
      %43 = tpu.reciprocal %42 : vector<1x128xf32> -> vector<1x128xf32>
      %44 = vector.extract_strided_slice %41 {offsets = [0, 0], sizes = [16, 128], strides = [1, 1]} : vector<24x128xf32> to vector<16x128xf32>
      %45 = vector.broadcast %43 : vector<1x128xf32> to vector<16x128xf32>
      %46 = arith.mulf %44, %45 : vector<16x128xf32>
      %c0_26 = arith.constant 0 : index
      %47 = memref.load %arg6[%c0_26] : memref<1xf32, #tpu.memory_space<smem>>
      %48 = vector.broadcast %47 : f32 to vector<16x128xf32>
      %49 = arith.mulf %48, %46 : vector<16x128xf32>
      %50 = arith.addf %17, %49 : vector<16x128xf32>
      %c0_27 = arith.constant 0 : index
      %c0_28 = arith.constant 0 : index
      %c0_29 = arith.constant 0 : index
      %51 = vector.load %arg7[%c0_27, %c0_28, %c0_29] : memref<1x16x128xf32, #tpu.memory_space<vmem>>, vector<1x16x128xf32>
      %52 = vector.shape_cast %51 : vector<1x16x128xf32> to vector<16x128xf32>
      %53 = vector.shape_cast %50 : vector<16x128xf32> to vector<1x16x128xf32>
      tpu.vector_store %arg7[%c0_27, %c0_28, %c0_29], %53 {strides = array<i32>} : memref<1x16x128xf32, #tpu.memory_space<vmem>>, vector<1x16x128xf32>,
    } else {
    }
    return
  }
  func.func @transform_0(%arg0: i32, %arg1: i32, %arg2: i32) -> (i32, i32, i32) {
    %c0_i32 = arith.constant 0 : i32
    %c0_i32_0 = arith.constant 0 : i32
    return %arg0, %c0_i32, %arg2 : i32, i32, i32
  }
  func.func @transform_1(%arg0: i32, %arg1: i32, %arg2: i32) -> (i32, i32) {
    %c0_i32 = arith.constant 0 : i32
    %c0_i32_0 = arith.constant 0 : i32
    %c0_i32_1 = arith.constant 0 : i32
    return %c0_i32, %c0_i32_0 : i32, i32
  }
  func.func @transform_2(%arg0: i32, %arg1: i32, %arg2: i32) -> (i32, i32) {
    %c0_i32 = arith.constant 0 : i32
    %c0_i32_0 = arith.constant 0 : i32
    %c0_i32_1 = arith.constant 0 : i32
    return %c0_i32, %c0_i32_0 : i32, i32
  }
  func.func @transform_3(%arg0: i32, %arg1: i32, %arg2: i32) -> i32 {
    %c0_i32 = arith.constant 0 : i32
    %c0_i32_0 = arith.constant 0 : i32
    return %c0_i32 : i32
  }
  func.func @transform_4(%arg0: i32, %arg1: i32, %arg2: i32) -> (i32, i32, i32) {
    %0 = arith.muli %arg2, %arg1 : i32
    %c0_i32 = arith.constant 0 : i32
    %c0_i32_0 = arith.constant 0 : i32
    return %arg0, %c0_i32, %0 : i32, i32, i32
  }
}

</mosaic_0001>

<llo_original>
// kernel: tpu_custom_call.1
$region0: #{tpu_custom_call.1}
  #allocation0 [shape = 'u32[]', space=smem, size = 0x4, offset = 0x4, fixed_abs, tag = 'smem constant byte address 0x4 - core index']
  #allocation1 [shape = 'u32[144,128]{1,0:T(1,128)}', space=vmem, size = 0x12000, scoped, tag = 'internal scratch']
  #allocation2 [shape = 'f32[24,16]{1,0:T(8,128)}', space=vmem, size = 0x3000, scoped, tag = 'scratch operand']
  #allocation3 [shape = 'f32[16,128]{1,0:T(8,128)}', space=vmem, size = 0x2000, scoped, tag = 'scratch operand']
  #allocation4 [shape = 'f32[1]{0:T(128)S(6)}', space=smem, size = 0x200, scoped, tag = 'scoped memory for tpu_custom_call.1']
  %s0 = inlined_call_operand.vmem [shape: f32[2,16,256], index: 0, kind: input, shape index: {}]
  %s1 = inlined_call_operand.vmem [shape: f32[40,16], index: 1, kind: input, shape index: {}]
  %s2 = inlined_call_operand.vmem [shape: f32[40,1], index: 2, kind: input, shape index: {}]
  %s3 = inlined_call_operand.<no memory space> [shape: f32[1], index: 3, kind: input, shape index: {}]
  %s4 = inlined_call_operand.hbm [shape: f32[2,16,256], index: 4, kind: output, shape index: {}]
  %s5 = sld [smem:[#allocation0]]
  $region103: #{tpu_custom_call.1} parent=0
    _
  %s7 = ssub.s32 1, %s5
  %s8 = scalar_select 0, %s7, %s5
  %9 = sst [smem:[#allocation4]] %s3
  $region1: #{tpu_custom_call.1} parent=0
    #allocation5 [shape = 'u8[16384]{0}', space=vmem, size = 0x4000, scoped, tag = 'input window, operand 0']
    #allocation6 [shape = 'u8[16384]{0}', space=vmem, size = 0x4000, scoped, tag = 'output window, operand 0']
    #allocation7 [shape = 's32[2]{0}', space=sflag, size = 0x8, scoped, tag = 'scoped memory for tpu_custom_call.1']
    %10 = vsyncpa [#allocation7], 0
    %s11 = scalar_lea.sflag [#allocation7], 1
    %12 = vsyncpa %s11, 0
    loop: start=0, step=1, limit=10
    $region2: #{tpu_custom_call.1} parent=1 // loop_pre_header
      _
    $region3: #{tpu_custom_call.1} parent=1 // loop_header
      %s14 = sphi 0, %s18
      %p15 = scmp.ge.s32.totalorder %s14, 10
      %s21 = sphi 0, %s40
      %s22 = sphi 0, %s36
      %s23 = sphi 0, %s32
      %s24 = sphi 0, %s21
      %s25 = sphi 0, %s22
      %s26 = sphi 0, %s23
      %s27 = sphi 0, %s24
      %s28 = sphi 0, %s25
      %s29 = sphi 0, %s26
      %s45 = sphi 0, %s47
      %s48 = sphi 0, %s45
      %s49 = sphi 0, %s48
      %s65 = sphi 0, %s49
      %s69 = sphi 0, %s69
      %s71 = sphi 0, %s69
      %s72 = sphi 0, %s71
      %s86 = sphi 0, %s72
      %s90 = sphi 0, %s90
      %s92 = sphi 0, %s90
      %s93 = sphi 0, %s92
      %s107 = sphi 0, %s93
      %s111 = sphi 0, %s111
      %s113 = sphi 0, %s111
      %s114 = sphi 0, %s113
      %s128 = sphi 0, %s114
      %s138 = sphi 0, %s140
      %s141 = sphi 0, %s138
      %s142 = sphi 0, %s141
      %s158 = sphi 0, %s142
    $region4: #{tpu_custom_call.1} parent=1 // loop_header_branch
      %17 = sbr.rel (%p15) target = $region8
    $region5: #{tpu_custom_call.1} parent=1 // loop_body
      %s19 = ssub.s32 %s14, 1
      %s20 = ssub.s32 %s14, 2
      %s30 = sadd.s32 1, %s23
      %p31 = scmp.ge.s32.totalorder %s30, 2
      %s32 = scalar_select %p31, 0, %s30
      %s33 = sadd.s32 1, %s22
      %s34 = scalar_select %p31, %s33, %s22
      %p35 = scmp.ge.s32.totalorder %s34, 2
      %s36 = scalar_select %p35, 0, %s34
      %s37 = sadd.s32 1, %s21
      %s38 = scalar_select %p35, %s37, %s21
      %p39 = scmp.ge.s32.totalorder %s38, 2
      %s40 = scalar_select %p39, 0, %s38
      %s41 = ssub.s32 %s21, %s40
      %s42 = ssub.s32 %s23, %s32
      %s43 = sor.u32 %s41, %s42
      %p44 = scmp.eq.s32.totalorder %s43, 0
      %s46 = sadd.s32 %s45, 1
      %s47 = scalar_select %p44, %s45, %s46
      %p50 = pneg %p44
      %p51 = scmp.eq.s32.totalorder %s14, 7
      %p52 = por %p50, %p51
      %p53 = scmp.ne.s32.totalorder %s45, %s48
      %p54 = scmp.eq.s32.totalorder %s14, 0
      %p55 = por %p53, %p54
      %p56 = scmp.ne.s32.totalorder %s45, %s48
      %p57 = scmp.eq.s32.totalorder %s19, 7
      %p58 = por %p56, %p57
      %p59 = scmp.ne.s32.totalorder %s48, %s49
      %p60 = scmp.eq.s32.totalorder %s19, 0
      %p61 = por %p59, %p60
      %p62 = scmp.ne.s32.totalorder %s48, %s49
      %p63 = scmp.eq.s32.totalorder %s20, 7
      %p64 = por %p62, %p63
      %p66 = scmp.ne.s32.totalorder %s49, %s65
      %p67 = scmp.eq.s32.totalorder %s20, 0
      %p68 = por %p66, %p67
      %s70 = sadd.s32 %s69, 1
      %p73 = scmp.eq.s32.totalorder %s14, 7
      %p74 = scmp.ne.s32.totalorder %s69, %s71
      %p75 = scmp.eq.s32.totalorder %s14, 0
      %p76 = por %p74, %p75
      %p77 = scmp.ne.s32.totalorder %s69, %s71
      %p78 = scmp.eq.s32.totalorder %s19, 7
      %p79 = por %p77, %p78
      %p80 = scmp.ne.s32.totalorder %s71, %s72
      %p81 = scmp.eq.s32.totalorder %s19, 0
      %p82 = por %p80, %p81
      %p83 = scmp.ne.s32.totalorder %s71, %s72
      %p84 = scmp.eq.s32.totalorder %s20, 7
      %p85 = por %p83, %p84
      %p87 = scmp.ne.s32.totalorder %s72, %s86
      %p88 = scmp.eq.s32.totalorder %s20, 0
      %p89 = por %p87, %p88
      %s91 = sadd.s32 %s90, 1
      %p94 = scmp.eq.s32.totalorder %s14, 7
      %p95 = scmp.ne.s32.totalorder %s90, %s92
      %p96 = scmp.eq.s32.totalorder %s14, 0
      %p97 = por %p95, %p96
      %p98 = scmp.ne.s32.totalorder %s90, %s92
      %p99 = scmp.eq.s32.totalorder %s19, 7
      %p100 = por %p98, %p99
      %p101 = scmp.ne.s32.totalorder %s92, %s93
      %p102 = scmp.eq.s32.totalorder %s19, 0
      %p103 = por %p101, %p102
      %p104 = scmp.ne.s32.totalorder %s92, %s93
      %p105 = scmp.eq.s32.totalorder %s20, 7
      %p106 = por %p104, %p105
      %p108 = scmp.ne.s32.totalorder %s93, %s107
      %p109 = scmp.eq.s32.totalorder %s20, 0
      %p110 = por %p108, %p109
      %s112 = sadd.s32 %s111, 1
      %p115 = scmp.eq.s32.totalorder %s14, 7
      %p116 = scmp.ne.s32.totalorder %s111, %s113
      %p117 = scmp.eq.s32.totalorder %s14, 0
      %p118 = por %p116, %p117
      %p119 = scmp.ne.s32.totalorder %s111, %s113
      %p120 = scmp.eq.s32.totalorder %s19, 7
      %p121 = por %p119, %p120
      %p122 = scmp.ne.s32.totalorder %s113, %s114
      %p123 = scmp.eq.s32.totalorder %s19, 0
      %p124 = por %p122, %p123
      %p125 = scmp.ne.s32.totalorder %s113, %s114
      %p126 = scmp.eq.s32.totalorder %s20, 7
      %p127 = por %p125, %p126
      %p129 = scmp.ne.s32.totalorder %s114, %s128
      %p130 = scmp.eq.s32.totalorder %s20, 0
      %p131 = por %p129, %p130
      %s132 = smul.u32 %s23, %s22
      %s133 = smul.u32 %s32, %s36
      %s134 = ssub.s32 %s21, %s40
      %s135 = ssub.s32 %s132, %s133
      %s136 = sor.u32 %s134, %s135
      %p137 = scmp.eq.s32.totalorder %s136, 0
      %s139 = sadd.s32 %s138, 1
      %s140 = scalar_select %p137, %s138, %s139
      %p143 = pneg %p137
      %p144 = scmp.eq.s32.totalorder %s14, 7
      %p145 = por %p143, %p144
      %p146 = scmp.ne.s32.totalorder %s138, %s141
      %p147 = scmp.eq.s32.totalorder %s14, 0
      %p148 = por %p146, %p147
      %p149 = scmp.ne.s32.totalorder %s138, %s141
      %p150 = scmp.eq.s32.totalorder %s19, 7
      %p151 = por %p149, %p150
      %p152 = scmp.ne.s32.totalorder %s141, %s142
      %p153 = scmp.eq.s32.totalorder %s19, 0
      %p154 = por %p152, %p153
      %p155 = scmp.ne.s32.totalorder %s141, %s142
      %p156 = scmp.eq.s32.totalorder %s20, 7
      %p157 = por %p155, %p156
      %p159 = scmp.ne.s32.totalorder %s142, %s158
      %p160 = scmp.eq.s32.totalorder %s20, 0
      %p161 = por %p159, %p160
      %p162 = scmp.le.s32.totalorder 1, %s14
      %p163 = scmp.lt.s32.totalorder %s14, 9
      %p164 = pnand %p162, %p163
      %p165 = pneg %p164
      // Predicated region
      $region9: #{tpu_custom_call.1} parent=5 // pred_check
        _
      $region10: #{tpu_custom_call.1} parent=5 // pred_check_branch
        %167 = sbr.rel (%p164) target = $region12
      $region11: #{tpu_custom_call.1} parent=5 // pred_region
        %s168 = ssub.s32 %s14, 1
        // Predicated region
        $region13: #{tpu_custom_call.1} parent=11 // pred_check
          %p169 = pneg %p82
        $region14: #{tpu_custom_call.1} parent=11 // pred_check_branch
          %171 = sbr.rel (%p169) target = $region16
        $region15: #{tpu_custom_call.1} parent=11 // pred_region
          _
        $region16: #{tpu_custom_call.1} parent=11 // pred_fallthru
          _
        // Predicated region
        $region17: #{tpu_custom_call.1} parent=11 // pred_check
          %p172 = pneg %p103
        $region18: #{tpu_custom_call.1} parent=11 // pred_check_branch
          %174 = sbr.rel (%p172) target = $region20
        $region19: #{tpu_custom_call.1} parent=11 // pred_region
          _
        $region20: #{tpu_custom_call.1} parent=11 // pred_fallthru
          _
        // Predicated region
        $region21: #{tpu_custom_call.1} parent=11 // pred_check
          %p175 = pneg %p124
        $region22: #{tpu_custom_call.1} parent=11 // pred_check_branch
          %177 = sbr.rel (%p175) target = $region24
        $region23: #{tpu_custom_call.1} parent=11 // pred_region
          _
        $region24: #{tpu_custom_call.1} parent=11 // pred_fallthru
          _
      $region12: #{tpu_custom_call.1} parent=5 // pred_fallthru
        _
      %p178 = scmp.lt.s32.totalorder %s14, 8
      // Predicated region
      $region25: #{tpu_custom_call.1} parent=5 // pred_check
        %p179 = pneg %p178
      $region26: #{tpu_custom_call.1} parent=5 // pred_check_branch
        %181 = sbr.rel (%p179) target = $region28
      $region27: #{tpu_custom_call.1} parent=5 // pred_region
        // Predicated region
        $region29: #{tpu_custom_call.1} parent=27 // pred_check
          %p182 = pneg %p55
        $region30: #{tpu_custom_call.1} parent=27 // pred_check_branch
          %184 = sbr.rel (%p182) target = $region32
        $region31: #{tpu_custom_call.1} parent=27 // pred_region
          %s185 = sand.u32 %s45, 1
          %s186 = sand.u32 %s45, 1
          %s187 = smul.addr %s186, 16
          %s188 = scalar_lea.vmem [#allocation5], %s187
          %s189 = smul.addr %s21, 4
          %s190 = sadd.s32 %s23, %s189
          %s191 = smul.addr %s190, 8
          %s192 = scalar_lea.vmem %s0, %s191
          // Predicated region
          $region33: #{tpu_custom_call.1} parent=31 // pred_check
            _
          $region34: #{tpu_custom_call.1} parent=31 // pred_check_branch
            %194 = sbr.rel (0) target = $region36
          $region35: #{tpu_custom_call.1} parent=31 // pred_region
            // Predicated region
            $region37: #{tpu_custom_call.1} parent=35 // pred_check
              _
            $region38: #{tpu_custom_call.1} parent=35 // pred_check_branch
              %196 = sbr.rel (0) target = $region40
            $region39: #{tpu_custom_call.1} parent=35 // pred_region
              // Predicated region
              $region52: #{tpu_custom_call.1} parent=39 // pred_check
                _
              $region53: #{tpu_custom_call.1} parent=39 // pred_check_branch
                %214 = sbr.rel (0) target = $region55
              $region54: #{tpu_custom_call.1} parent=39 // pred_region
                loop: start=0, step=1, limit=1
                $region56: #{tpu_custom_call.1} parent=54 // loop_pre_header
                  _
                $region57: #{tpu_custom_call.1} parent=54 // loop_header
                  %s216 = sphi 0, %s220
                  %p217 = scmp.ge.s32.totalorder %s216, 1
                  %s221 = sphi %s192, %s192
                  %s222 = sphi %s188, %s188
                $region58: #{tpu_custom_call.1} parent=54 // loop_header_branch
                  %219 = sbr.rel (%p217) target = $region62
                $region59: #{tpu_custom_call.1} parent=54 // loop_body
                  %v223 = vld [vmem:[%s221] sm:$0xff]
                  %224 = vst [vmem:[%s222] sm:$0xff] %v223
                  %v225 = vld [vmem:[%s221 + $0x10] sm:$0xff]
                  %226 = vst [vmem:[%s222 + $0x8] sm:$0xff] %v225
                $region60: #{tpu_custom_call.1} parent=54 // loop_footer
                  %s220 = sadd.s32 1, %s216
                $region61: #{tpu_custom_call.1} parent=54 // loop_footer_branch
                  %215 = sbr.rel target = $region57
                $region62: #{tpu_custom_call.1} parent=54 // loop_exit
                  _
              $region55: #{tpu_custom_call.1} parent=39 // pred_fallthru
                _
              // Predicated region
              $region63: #{tpu_custom_call.1} parent=39 // pred_check
                _
              $region64: #{tpu_custom_call.1} parent=39 // pred_check_branch
                %228 = sbr.rel target = $region66
              $region65: #{tpu_custom_call.1} parent=39 // pred_region
                _
              $region66: #{tpu_custom_call.1} parent=39 // pred_fallthru
                _
            $region40: #{tpu_custom_call.1} parent=35 // pred_fallthru
              _
            // Predicated region
            $region41: #{tpu_custom_call.1} parent=35 // pred_check
              _
            $region42: #{tpu_custom_call.1} parent=35 // pred_check_branch
              %198 = sbr.rel target = $region44
            $region43: #{tpu_custom_call.1} parent=35 // pred_region
              %s200 = ssub.s32 256, 1
              loop: start=0, step=1, limit=1
              $region45: #{tpu_custom_call.1} parent=43 // loop_pre_header
                _
              $region46: #{tpu_custom_call.1} parent=43 // loop_header
                %s202 = sphi 0, %s206
                %p203 = scmp.ge.s32.totalorder %s202, 1
                %s207 = sphi %s192, %s192
                %s208 = sphi %s188, %s188
              $region47: #{tpu_custom_call.1} parent=43 // loop_header_branch
                %205 = sbr.rel (%p203) target = $region51
              $region48: #{tpu_custom_call.1} parent=43 // loop_body
                %v209 = vld [vmem:[%s207] sm:%s200]
                %210 = vst [vmem:[%s208] sm:%s200] %v209
                %v211 = vld [vmem:[%s207 + $0x10] sm:%s200]
                %212 = vst [vmem:[%s208 + $0x8] sm:%s200] %v211
              $region49: #{tpu_custom_call.1} parent=43 // loop_footer
                %s206 = sadd.s32 1, %s202
              $region50: #{tpu_custom_call.1} parent=43 // loop_footer_branch
                %201 = sbr.rel target = $region46
              $region51: #{tpu_custom_call.1} parent=43 // loop_exit
                _
            $region44: #{tpu_custom_call.1} parent=35 // pred_fallthru
              _
          $region36: #{tpu_custom_call.1} parent=31 // pred_fallthru
            _
          %229 = vnop
        $region32: #{tpu_custom_call.1} parent=27 // pred_fallthru
          _
      $region28: #{tpu_custom_call.1} parent=5 // pred_fallthru
        _
      %p230 = scmp.le.s32.totalorder 1, %s14
      %p231 = scmp.lt.s32.totalorder %s14, 9
      %p232 = pnand %p230, %p231
      %p233 = pneg %p232
      // Predicated region
      $region67: #{tpu_custom_call.1} parent=5 // pred_check
        _
      $region68: #{tpu_custom_call.1} parent=5 // pred_check_branch
        %235 = sbr.rel (%p232) target = $region70
      $region69: #{tpu_custom_call.1} parent=5 // pred_region
        %s236 = ssub.s32 %s14, 1
        %s237 = sand.u32 %s48, 1
        %s238 = sand.u32 %s48, 1
        %s239 = smul.addr %s238, 16
        %s240 = scalar_lea.vmem [#allocation5], %s239
        // Predicated region
        $region71: #{tpu_custom_call.1} parent=69 // pred_check
          %p241 = pneg %p61
        $region72: #{tpu_custom_call.1} parent=69 // pred_check_branch
          %243 = sbr.rel (%p241) target = $region74
        $region73: #{tpu_custom_call.1} parent=69 // pred_region
          _
        $region74: #{tpu_custom_call.1} parent=69 // pred_fallthru
          _
        %s244 = sand.u32 %s48, 1
        %s245 = sand.u32 %s48, 1
        %s246 = smul.addr %s245, 16
        %s247 = scalar_lea.vmem [#allocation5], %s246
        %p248 = pneg %p61
        %p249 = pneg %p58
        %p250 = pneg %p82
        %p251 = pneg %p79
        %p252 = pneg %p103
        %p253 = pneg %p100
        %p254 = pneg %p124
        %p255 = pneg %p121
        %p256 = pneg %p154
        %p257 = pneg %p151
        %s258 = sand.u32 %s141, 1
        %s259 = scalar_lea.sflag [#allocation7], %s258
        %s260 = sand.u32 %s141, 1
        %s261 = smul.addr %s260, 16
        %s262 = scalar_lea.vmem [#allocation6], %s261
        %s263 = smul.u32 %s26, %s25
        %p264 = scmp.eq.s32.totalorder %s25, 0
        %p265 = scmp.eq.s32.totalorder %s26, 0
        %p266 = pnand %p264, %p265
        %p267 = pneg %p266
        // Predicated region
        $region75: #{tpu_custom_call.1} parent=69 // pred_check
          _
        $region76: #{tpu_custom_call.1} parent=69 // pred_check_branch
          %269 = sbr.rel (%p266) target = $region78
        $region77: #{tpu_custom_call.1} parent=69 // pred_region
          %vm270 = vcmask 130048
          %271 = vst.msk [vmem:[#allocation2] sm:$0xff] %vm270, 0.0
          %272 = vst.msk [vmem:[#allocation2 + $0x8] sm:$0xff] %vm270, 0.0
          %273 = vst.msk [vmem:[#allocation2 + $0x10] sm:$0xff] %vm270, 0.0
          %v274 = vld [vmem:[%s240] sm:$0xff]
          %v275 = vld [vmem:[%s240 + $0x8] sm:$0xff]
          %276 = vst [vmem:[%s262] sm:$0xff] %v274
          %277 = vst [vmem:[%s262 + $0x8] sm:$0xff] %v275
        $region78: #{tpu_custom_call.1} parent=69 // pred_fallthru
          _
        // Predicated region
        $region79: #{tpu_custom_call.1} parent=69 // pred_check
          %p278 = pneg %p264
        $region80: #{tpu_custom_call.1} parent=69 // pred_check_branch
          %280 = sbr.rel (%p278) target = $region82
        $region81: #{tpu_custom_call.1} parent=69 // pred_region
          %v281 = vld [vmem:[%s240] sm:$0xff]
          %v282 = vld [vmem:[%s240 + $0x8] sm:$0xff]
          %v283 = vld [vmem:[%s1 + $0x8] sm:$0xff]
          %v284 = vld [vmem:[%s1 + $0x10] sm:$0xff]
          %v285 = vld [vmem:[%s1 + $0x18] sm:$0xff]
          %v286 = vld [vmem:[%s1 + $0x20] sm:$0xff]
          %v287 = vld [vmem:[%s2 + $0x8] sm:$0xff]
          %v288 = vld [vmem:[%s2 + $0x10] sm:$0xff]
          %v289 = vld [vmem:[%s2 + $0x18] sm:$0xff]
          %v290 = vld [vmem:[%s2 + $0x20] sm:$0xff]
          %292 = vset.pattern.permute.xlu0 0
          %293 = vperm.xlu0 %292, %v287
          %v294 = vpop.permute.xlu0 %293
          %297 = vset.pattern.permute.xlu0 0
          %298 = vperm.xlu0 %297, %v288
          %v299 = vpop.permute.xlu0 %298
          %302 = vset.pattern.permute.xlu0 0
          %303 = vperm.xlu0 %302, %v289
          %v304 = vpop.permute.xlu0 %303
          %307 = vset.pattern.permute.xlu0 0
          %308 = vperm.xlu0 %307, %v290
          %v309 = vpop.permute.xlu0 %308
          %vm311 = vcmask 130048
          %v313 = vsel %vm311, %v283, 0
          %v316 = vsel %vm311, %v284, 0
          %v319 = vsel %vm311, %v285, 0
          %v322 = vsel %vm311, %v286, 0
          %324 = vmatprep.subr.mxu0 0.0
          %325 = vmatpush1.msra.mxu0 0.0
          %326 = vmatprep.subr.mxu0 0.0
          %327 = vmatpush1.msra.mxu0 0.0
          %328 = vmatprep.subr.mxu0 0.0
          %329 = vmatpush1.msra.mxu0 0.0
          %330 = vmatprep.subr.mxu0 0.0
          %331 = vmatpush1.msra.mxu0 0.0
          %332 = vmatprep.subr.mxu0 0.0
          %333 = vmatpush1.msra.mxu0 0.0
          %334 = vmatprep.subr.mxu0 0.0
          %335 = vmatpush1.msra.mxu0 0.0
          %336 = vmatprep.subr.mxu0 0.0
          %337 = vmatpush1.msra.mxu0 0.0
          %338 = vmatprep.subr.mxu0 0.0
          %339 = vmatpush1.msra.mxu0 0.0
          %340 = vmatprep.subr.mxu0 0.0
          %341 = vmatpush1.msra.mxu0 0.0
          %342 = vmatprep.subr.mxu0 0.0
          %343 = vmatpush1.msra.mxu0 0.0
          %344 = vmatprep.subr.mxu0 0.0
          %345 = vmatpush1.msra.mxu0 0.0
          %346 = vmatprep.subr.mxu0 0.0
          %347 = vmatpush1.msra.mxu0 0.0
          %348 = vmatprep.subr.mxu0 0.0
          %349 = vmatpush1.msra.mxu0 0.0
          %350 = vmatprep.subr.mxu0 0.0
          %351 = vmatpush1.msra.mxu0 0.0
          %352 = vmatprep.subr.mxu0 0.0
          %353 = vmatpush1.msra.mxu0 %v282
          %354 = vmatprep.subr.mxu0 0.0
          %355 = vmatpush1.msra.mxu0 %v281
          %356 = vmatprep.subr.mxu0 0.0
          %357 = vmatpush2.msra.mxu0 0.0
          %358 = vmatprep.subr.mxu0 0.0
          %359 = vmatpush2.msra.mxu0 0.0
          %360 = vmatprep.subr.mxu0 0.0
          %361 = vmatpush2.msra.mxu0 0.0
          %362 = vmatprep.subr.mxu0 0.0
          %363 = vmatpush2.msra.mxu0 0.0
          %364 = vmatprep.subr.mxu0 0.0
          %365 = vmatpush2.msra.mxu0 0.0
          %366 = vmatprep.subr.mxu0 0.0
          %367 = vmatpush2.msra.mxu0 0.0
          %368 = vmatprep.subr.mxu0 0.0
          %369 = vmatpush2.msra.mxu0 0.0
          %370 = vmatprep.subr.mxu0 0.0
          %371 = vmatpush2.msra.mxu0 0.0
          %372 = vmatprep.subr.mxu0 0.0
          %373 = vmatpush2.msra.mxu0 0.0
          %374 = vmatprep.subr.mxu0 0.0
          %375 = vmatpush2.msra.mxu0 0.0
          %376 = vmatprep.subr.mxu0 0.0
          %377 = vmatpush2.msra.mxu0 0.0
          %378 = vmatprep.subr.mxu0 0.0
          %379 = vmatpush2.msra.mxu0 0.0
          %380 = vmatprep.subr.mxu0 0.0
          %381 = vmatpush2.msra.mxu0 0.0
          %382 = vmatprep.subr.mxu0 0.0
          %383 = vmatpush2.msra.mxu0 0.0
          %384 = vmatprep.subr.mxu0 0.0
          %385 = vmatpush2.msra.mxu0 0.0
          %386 = vmatprep.subr.mxu0 0.0
          %387 = vmatpush2.msra.mxu0 0.0
          %388 = vmatprep.mubr.f32.mxu0 0.0
          %389 = vmatmul.mubr.f32.gmra.mxu0 %v313
          %v390 = vpop.f32.mrf.mxu0
          %v391 = vadd.f32 %v294, %v390
          %v392 = vpop.f32.mrf.mxu0
          %393 = vmatprep.mubr.f32.mxu0 0.0
          %394 = vmatmul.mubr.f32.gmra.mxu0 %v316
          %v395 = vpop.f32.mrf.mxu0
          %v396 = vadd.f32 %v299, %v395
          %v397 = vpop.f32.mrf.mxu0
          %398 = vmatprep.mubr.f32.mxu0 0.0
          %399 = vmatmul.mubr.f32.gmra.mxu0 %v319
          %v400 = vpop.f32.mrf.mxu0
          %v401 = vadd.f32 %v304, %v400
          %v402 = vpop.f32.mrf.mxu0
          %403 = vmatprep.mubr.f32.mxu0 0.0
          %404 = vmatmul.mubr.f32.gmra.mxu0 %v322
          %v405 = vpop.f32.mrf.mxu0
          %v406 = vadd.f32 %v309, %v405
          %v407 = vpop.f32.mrf.mxu0
          %408 = vdwg.mxu0
          %v409 = vmul.f32 %v391, %v391
          %v410 = vrot.slane %v409, 4
          %v411 = vadd.f32 %v409, %v410
          %v412 = vrot.slane %v411, 2
          %v413 = vadd.f32 %v411, %v412
          %v414 = vrot.slane %v413, 1
          %v415 = vadd.f32 %v413, %v414
          %v416 = vrsqrt.pop %v415
          %v417 = vmul.f32 %v391, %v416
          %418 = vst [vmem:[#allocation3] sm:$0xff] %v417
          %v419 = vlaneseq
          %v420 = vshrl.u32 %v419, 7
          %vm421 = vcmp.eq.s32.totalorder %v420, 0
          %v422 = vsel %vm421, 1.0, 0.0
          %423 = vst [vmem:[#allocation3 + $0x8] sm:$0xff] %v422
          %v424 = vld [vmem:[#allocation2] sm:$0xff]
          %v425 = vld [vmem:[#allocation2 + $0x8] sm:$0xff]
          %v426 = vld [vmem:[#allocation2 + $0x10] sm:$0xff]
          %v427 = vld [vmem:[#allocation3] sm:$0xff]
          %v428 = vld [vmem:[#allocation3 + $0x8] sm:$0xff]
          %429 = vmatprep.subr.mxu0 0.0
          %430 = vmatpush1.xpose.msra.mxu0 0.0
          %431 = vmatprep.subr.mxu0 0.0
          %432 = vmatpush1.xpose.msra.mxu0 0.0
          %433 = vmatprep.subr.mxu0 0.0
          %434 = vmatpush1.xpose.msra.mxu0 0.0
          %435 = vmatprep.subr.mxu0 0.0
          %436 = vmatpush1.xpose.msra.mxu0 0.0
          %437 = vmatprep.subr.mxu0 0.0
          %438 = vmatpush1.xpose.msra.mxu0 0.0
          %439 = vmatprep.subr.mxu0 0.0
          %440 = vmatpush1.xpose.msra.mxu0 0.0
          %441 = vmatprep.subr.mxu0 0.0
          %442 = vmatpush1.xpose.msra.mxu0 0.0
          %443 = vmatprep.subr.mxu0 0.0
          %444 = vmatpush1.xpose.msra.mxu0 0.0
          %445 = vmatprep.subr.mxu0 0.0
          %446 = vmatpush1.xpose.msra.mxu0 0.0
          %447 = vmatprep.subr.mxu0 0.0
          %448 = vmatpush1.xpose.msra.mxu0 0.0
          %449 = vmatprep.subr.mxu0 0.0
          %450 = vmatpush1.xpose.msra.mxu0 0.0
          %451 = vmatprep.subr.mxu0 0.0
          %452 = vmatpush1.xpose.msra.mxu0 0.0
          %453 = vmatprep.subr.mxu0 0.0
          %454 = vmatpush1.xpose.msra.mxu0 0.0
          %455 = vmatprep.subr.mxu0 0.0
          %456 = vmatpush1.xpose.msra.mxu0 0.0
          %457 = vmatprep.subr.mxu0 0.0
          %458 = vmatpush1.xpose.msra.mxu0 %v428
          %459 = vmatprep.subr.mxu0 0.0
          %460 = vmatpush1.xpose.msra.mxu0 %v427
          %461 = vmatprep.subr.mxu0 0.0
          %462 = vmatpush2.xpose.msra.mxu0 0.0
          %463 = vmatprep.subr.mxu0 0.0
          %464 = vmatpush2.xpose.msra.mxu0 0.0
          %465 = vmatprep.subr.mxu0 0.0
          %466 = vmatpush2.xpose.msra.mxu0 0.0
          %467 = vmatprep.subr.mxu0 0.0
          %468 = vmatpush2.xpose.msra.mxu0 0.0
          %469 = vmatprep.subr.mxu0 0.0
          %470 = vmatpush2.xpose.msra.mxu0 0.0
          %471 = vmatprep.subr.mxu0 0.0
          %472 = vmatpush2.xpose.msra.mxu0 0.0
          %473 = vmatprep.subr.mxu0 0.0
          %474 = vmatpush2.xpose.msra.mxu0 0.0
          %475 = vmatprep.subr.mxu0 0.0
          %476 = vmatpush2.xpose.msra.mxu0 0.0
          %477 = vmatprep.subr.mxu0 0.0
          %478 = vmatpush2.xpose.msra.mxu0 0.0
          %479 = vmatprep.subr.mxu0 0.0
          %480 = vmatpush2.xpose.msra.mxu0 0.0
          %481 = vmatprep.subr.mxu0 0.0
          %482 = vmatpush2.xpose.msra.mxu0 0.0
          %483 = vmatprep.subr.mxu0 0.0
          %484 = vmatpush2.xpose.msra.mxu0 0.0
          %485 = vmatprep.subr.mxu0 0.0
          %486 = vmatpush2.xpose.msra.mxu0 0.0
          %487 = vmatprep.subr.mxu0 0.0
          %488 = vmatpush2.xpose.msra.mxu0 0.0
          %489 = vmatprep.subr.mxu0 0.0
          %490 = vmatpush2.xpose.msra.mxu0 0.0
          %491 = vmatprep.subr.mxu0 0.0
          %492 = vmatpush2.xpose.msra.mxu0 0.0
          %493 = vmatprep.mubr.f32.mxu0 0.0
          %494 = vmatmul.mubr.f32.gmra.mxu0 %v396
          %v495 = vpop.f32.mrf.mxu0
          %v496 = vadd.f32 0.0, %v495
          %v497 = vpop.f32.mrf.mxu0
          %498 = vmatprep.mubr.f32.mxu0 0.0
          %499 = vmatmul.mubr.f32.gmra.mxu0 %v401
          %v500 = vpop.f32.mrf.mxu0
          %v501 = vadd.f32 0.0, %v500
          %v502 = vpop.f32.mrf.mxu0
          %503 = vmatprep.mubr.f32.mxu0 0.0
          %504 = vmatmul.mubr.f32.gmra.mxu0 %v406
          %v505 = vpop.f32.mrf.mxu0
          %v506 = vadd.f32 0.0, %v505
          %v507 = vpop.f32.mrf.mxu0
          %508 = vdwg.mxu0
          %v509 = vadd.f32 %v424, %v496
          %v510 = vadd.f32 %v425, %v501
          %v511 = vadd.f32 %v426, %v506
          %512 = vst.msk [vmem:[#allocation2] sm:$0xff] %vm311, %v509
          %513 = vst.msk [vmem:[#allocation2 + $0x8] sm:$0xff] %vm311, %v510
          %514 = vst.msk [vmem:[#allocation2 + $0x10] sm:$0xff] %vm311, %v511
        $region82: #{tpu_custom_call.1} parent=69 // pred_fallthru
          _
        %p515 = scmp.eq.s32.totalorder %s26, 1
        %p516 = pnand %p264, %p515
        %p517 = pneg %p516
        // Predicated region
        $region83: #{tpu_custom_call.1} parent=69 // pred_check
          _
        $region84: #{tpu_custom_call.1} parent=69 // pred_check_branch
          %519 = sbr.rel (%p516) target = $region86
        $region85: #{tpu_custom_call.1} parent=69 // pred_region
          %v520 = vlaneseq
          %v521 = vand.u32 %v520, 127
          %vm522 = vcmp.lt.s32.totalorder %v521, 8
          %v523 = vsel %vm522, 1e-06, 0.0
          %v524 = vld [vmem:[#allocation2 + $0x10] sm:$0xff]
          %v525 = vadd.f32 %v524, %v523
          %vm526 = vcmask 130048
          %527 = vst.msk [vmem:[#allocation2 + $0x10] sm:$0xff] %vm526, %v525
        $region86: #{tpu_custom_call.1} parent=69 // pred_fallthru
          _
        %p528 = scmp.eq.s32.totalorder %s25, 1
        // Predicated region
        $region87: #{tpu_custom_call.1} parent=69 // pred_check
          %p529 = pneg %p528
        $region88: #{tpu_custom_call.1} parent=69 // pred_check_branch
          %531 = sbr.rel (%p529) target = $region90
        $region89: #{tpu_custom_call.1} parent=69 // pred_region
          %v532 = vld [vmem:[%s240] sm:$0xff]
          %v533 = vld [vmem:[%s240 + $0x8] sm:$0xff]
          %v534 = vld [vmem:[%s1] sm:$0xff]
          %v535 = vld [vmem:[%s2] sm:$0xff]
          %537 = vset.pattern.permute.xlu0 0
          %538 = vperm.xlu0 %537, %v535
          %v539 = vpop.permute.xlu0 %538
          %vm541 = vcmask 130048
          %v543 = vsel %vm541, %v534, 0
          %545 = vmatprep.subr.mxu0 0.0
          %546 = vmatpush1.msra.mxu0 0.0
          %547 = vmatprep.subr.mxu0 0.0
          %548 = vmatpush1.msra.mxu0 0.0
          %549 = vmatprep.subr.mxu0 0.0
          %550 = vmatpush1.msra.mxu0 0.0
          %551 = vmatprep.subr.mxu0 0.0
          %552 = vmatpush1.msra.mxu0 0.0
          %553 = vmatprep.subr.mxu0 0.0
          %554 = vmatpush1.msra.mxu0 0.0
          %555 = vmatprep.subr.mxu0 0.0
          %556 = vmatpush1.msra.mxu0 0.0
          %557 = vmatprep.subr.mxu0 0.0
          %558 = vmatpush1.msra.mxu0 0.0
          %559 = vmatprep.subr.mxu0 0.0
          %560 = vmatpush1.msra.mxu0 0.0
          %561 = vmatprep.subr.mxu0 0.0
          %562 = vmatpush1.msra.mxu0 0.0
          %563 = vmatprep.subr.mxu0 0.0
          %564 = vmatpush1.msra.mxu0 0.0
          %565 = vmatprep.subr.mxu0 0.0
          %566 = vmatpush1.msra.mxu0 0.0
          %567 = vmatprep.subr.mxu0 0.0
          %568 = vmatpush1.msra.mxu0 0.0
          %569 = vmatprep.subr.mxu0 0.0
          %570 = vmatpush1.msra.mxu0 0.0
          %571 = vmatprep.subr.mxu0 0.0
          %572 = vmatpush1.msra.mxu0 0.0
          %573 = vmatprep.subr.mxu0 0.0
          %574 = vmatpush1.msra.mxu0 %v533
          %575 = vmatprep.subr.mxu0 0.0
          %576 = vmatpush1.msra.mxu0 %v532
          %577 = vmatprep.subr.mxu0 0.0
          %578 = vmatpush2.msra.mxu0 0.0
          %579 = vmatprep.subr.mxu0 0.0
          %580 = vmatpush2.msra.mxu0 0.0
          %581 = vmatprep.subr.mxu0 0.0
          %582 = vmatpush2.msra.mxu0 0.0
          %583 = vmatprep.subr.mxu0 0.0
          %584 = vmatpush2.msra.mxu0 0.0
          %585 = vmatprep.subr.mxu0 0.0
          %586 = vmatpush2.msra.mxu0 0.0
          %587 = vmatprep.subr.mxu0 0.0
          %588 = vmatpush2.msra.mxu0 0.0
          %589 = vmatprep.subr.mxu0 0.0
          %590 = vmatpush2.msra.mxu0 0.0
          %591 = vmatprep.subr.mxu0 0.0
          %592 = vmatpush2.msra.mxu0 0.0
          %593 = vmatprep.subr.mxu0 0.0
          %594 = vmatpush2.msra.mxu0 0.0
          %595 = vmatprep.subr.mxu0 0.0
          %596 = vmatpush2.msra.mxu0 0.0
          %597 = vmatprep.subr.mxu0 0.0
          %598 = vmatpush2.msra.mxu0 0.0
          %599 = vmatprep.subr.mxu0 0.0
          %600 = vmatpush2.msra.mxu0 0.0
          %601 = vmatprep.subr.mxu0 0.0
          %602 = vmatpush2.msra.mxu0 0.0
          %603 = vmatprep.subr.mxu0 0.0
          %604 = vmatpush2.msra.mxu0 0.0
          %605 = vmatprep.subr.mxu0 0.0
          %606 = vmatpush2.msra.mxu0 0.0
          %607 = vmatprep.subr.mxu0 0.0
          %608 = vmatpush2.msra.mxu0 0.0
          %609 = vmatprep.mubr.f32.mxu0 0.0
          %610 = vmatmul.mubr.f32.gmra.mxu0 %v543
          %v611 = vpop.f32.mrf.mxu0
          %v612 = vadd.f32 %v539, %v611
          %v613 = vpop.f32.mrf.mxu0
          %614 = vdwg.mxu0
          %v615 = vmul.f32 %v612, %v612
          %v616 = vrot.slane %v615, 4
          %v617 = vadd.f32 %v615, %v616
          %v618 = vrot.slane %v617, 2
          %v619 = vadd.f32 %v617, %v618
          %v620 = vrot.slane %v619, 1
          %v621 = vadd.f32 %v619, %v620
          %v622 = vrsqrt.pop %v621
          %v623 = vmul.f32 %v612, %v622
          %624 = vst [vmem:[#allocation3] sm:$0xff] %v623
          %v625 = vlaneseq
          %v626 = vshrl.u32 %v625, 7
          %vm627 = vcmp.eq.s32.totalorder %v626, 0
          %v628 = vsel %vm627, 1.0, 0.0
          %629 = vst [vmem:[#allocation3 + $0x8] sm:$0xff] %v628
          %v630 = vld [vmem:[#allocation2] sm:$0xff]
          %v631 = vld [vmem:[#allocation2 + $0x8] sm:$0xff]
          %v632 = vld [vmem:[#allocation2 + $0x10] sm:$0xff]
          %v633 = vld [vmem:[#allocation3] sm:$0xff]
          %v634 = vld [vmem:[#allocation3 + $0x8] sm:$0xff]
          %v636 = vsel %vm541, %v630, 0
          %v639 = vsel %vm541, %v631, 0
          %v642 = vsel %vm541, %v632, 0
          %644 = vmatprep.subr.mxu0 0.0
          %645 = vmatpush1.msra.mxu0 0.0
          %646 = vmatprep.subr.mxu0 0.0
          %647 = vmatpush1.msra.mxu0 0.0
          %648 = vmatprep.subr.mxu0 0.0
          %649 = vmatpush1.msra.mxu0 0.0
          %650 = vmatprep.subr.mxu0 0.0
          %651 = vmatpush1.msra.mxu0 0.0
          %652 = vmatprep.subr.mxu0 0.0
          %653 = vmatpush1.msra.mxu0 0.0
          %654 = vmatprep.subr.mxu0 0.0
          %655 = vmatpush1.msra.mxu0 0.0
          %656 = vmatprep.subr.mxu0 0.0
          %657 = vmatpush1.msra.mxu0 0.0
          %658 = vmatprep.subr.mxu0 0.0
          %659 = vmatpush1.msra.mxu0 0.0
          %660 = vmatprep.subr.mxu0 0.0
          %661 = vmatpush1.msra.mxu0 0.0
          %662 = vmatprep.subr.mxu0 0.0
          %663 = vmatpush1.msra.mxu0 0.0
          %664 = vmatprep.subr.mxu0 0.0
          %665 = vmatpush1.msra.mxu0 0.0
          %666 = vmatprep.subr.mxu0 0.0
          %667 = vmatpush1.msra.mxu0 0.0
          %668 = vmatprep.subr.mxu0 0.0
          %669 = vmatpush1.msra.mxu0 0.0
          %670 = vmatprep.subr.mxu0 0.0
          %671 = vmatpush1.msra.mxu0 0.0
          %672 = vmatprep.subr.mxu0 0.0
          %673 = vmatpush1.msra.mxu0 %v634
          %674 = vmatprep.subr.mxu0 0.0
          %675 = vmatpush1.msra.mxu0 %v633
          %676 = vmatprep.subr.mxu0 0.0
          %677 = vmatpush2.msra.mxu0 0.0
          %678 = vmatprep.subr.mxu0 0.0
          %679 = vmatpush2.msra.mxu0 0.0
          %680 = vmatprep.subr.mxu0 0.0
          %681 = vmatpush2.msra.mxu0 0.0
          %682 = vmatprep.subr.mxu0 0.0
          %683 = vmatpush2.msra.mxu0 0.0
          %684 = vmatprep.subr.mxu0 0.0
          %685 = vmatpush2.msra.mxu0 0.0
          %686 = vmatprep.subr.mxu0 0.0
          %687 = vmatpush2.msra.mxu0 0.0
          %688 = vmatprep.subr.mxu0 0.0
          %689 = vmatpush2.msra.mxu0 0.0
          %690 = vmatprep.subr.mxu0 0.0
          %691 = vmatpush2.msra.mxu0 0.0
          %692 = vmatprep.subr.mxu0 0.0
          %693 = vmatpush2.msra.mxu0 0.0
          %694 = vmatprep.subr.mxu0 0.0
          %695 = vmatpush2.msra.mxu0 0.0
          %696 = vmatprep.subr.mxu0 0.0
          %697 = vmatpush2.msra.mxu0 0.0
          %698 = vmatprep.subr.mxu0 0.0
          %699 = vmatpush2.msra.mxu0 0.0
          %700 = vmatprep.subr.mxu0 0.0
          %701 = vmatpush2.msra.mxu0 0.0
          %702 = vmatprep.subr.mxu0 0.0
          %703 = vmatpush2.msra.mxu0 0.0
          %704 = vmatprep.subr.mxu0 0.0
          %705 = vmatpush2.msra.mxu0 0.0
          %706 = vmatprep.subr.mxu0 0.0
          %707 = vmatpush2.msra.mxu0 0.0
          %708 = vmatprep.mubr.f32.mxu0 0.0
          %709 = vmatmul.mubr.f32.gmra.mxu0 %v636
          %v710 = vpop.f32.mrf.mxu0
          %v711 = vadd.f32 0.0, %v710
          %v712 = vpop.f32.mrf.mxu0
          %713 = vmatprep.mubr.f32.mxu0 0.0
          %714 = vmatmul.mubr.f32.gmra.mxu0 %v639
          %v715 = vpop.f32.mrf.mxu0
          %v716 = vadd.f32 0.0, %v715
          %v717 = vpop.f32.mrf.mxu0
          %718 = vmatprep.mubr.f32.mxu0 0.0
          %719 = vmatmul.mubr.f32.gmra.mxu0 %v642
          %v720 = vpop.f32.mrf.mxu0
          %v721 = vadd.f32 0.0, %v720
          %v722 = vpop.f32.mrf.mxu0
          %723 = vdwg.mxu0
          %v724 = vrcp.pop %v721
          %v725 = vlaneseq
          %v726 = vshrl.u32 %v725, 7
          %v727 = vsub.s32 0, %v726
          %v728 = vrot.slane %v724, %v727
          %v729 = vmul.f32 %v711, %v728
          %v730 = vmul.f32 %v716, %v728
          %s731 = sld [smem:[#allocation4]]
          %v732 = vstv %s731
          %v733 = vmul.f32 %v732, %v729
          %v734 = vmul.f32 %v732, %v730
          %v735 = vadd.f32 %v532, %v733
          %v736 = vadd.f32 %v533, %v734
          %737 = vst [vmem:[%s262] sm:$0xff] %v735
          %738 = vst [vmem:[%s262 + $0x8] sm:$0xff] %v736
        $region90: #{tpu_custom_call.1} parent=69 // pred_fallthru
          _
        %s739 = sand.u32 %s141, 1
        %s740 = scalar_lea.sflag [#allocation7], %s739
        %s741 = sand.u32 %s141, 1
        %s742 = smul.addr %s741, 16
        %s743 = scalar_lea.vmem [#allocation6], %s742
        // Predicated region
        $region91: #{tpu_custom_call.1} parent=69 // pred_check
          %p744 = pneg %p151
        $region92: #{tpu_custom_call.1} parent=69 // pred_check_branch
          %746 = sbr.rel (%p744) target = $region94
        $region93: #{tpu_custom_call.1} parent=69 // pred_region
          %s747 = smul.u32 %s26, %s25
          %s749 = ssub.s32 256, 256
          %750 = vsyncadd %s740, %s749
          %s751 = smul.addr %s24, 4
          %s752 = sadd.s32 %s747, %s751
          %s753 = smul.addr %s752, 128
          %s754 = scalar_lea.hbm %s4, %s753
          %s755 = sshll.u32 %s743, 4
          %s756 = int_to_ptr.vmem [resolvable:$true] %s755
          %761 = dma.vmem_to_hbm [thread:$0]  %s756, 256, %s754, %s740, 128, 256, 8
        $region94: #{tpu_custom_call.1} parent=69 // pred_fallthru
          _
      $region70: #{tpu_custom_call.1} parent=5 // pred_fallthru
        _
      %p762 = scmp.le.s32.totalorder 2, %s14
      // Predicated region
      $region95: #{tpu_custom_call.1} parent=5 // pred_check
        %p763 = pneg %p762
      $region96: #{tpu_custom_call.1} parent=5 // pred_check_branch
        %765 = sbr.rel (%p763) target = $region98
      $region97: #{tpu_custom_call.1} parent=5 // pred_region
        %s766 = ssub.s32 %s14, 2
        // Predicated region
        $region99: #{tpu_custom_call.1} parent=97 // pred_check
          %p767 = pneg %p157
        $region100: #{tpu_custom_call.1} parent=97 // pred_check_branch
          %769 = sbr.rel (%p767) target = $region102
        $region101: #{tpu_custom_call.1} parent=97 // pred_region
          %s770 = sand.u32 %s142, 1
          %s771 = scalar_lea.sflag [#allocation7], %s770
          %s772 = sand.u32 %s142, 1
          %s773 = smul.addr %s772, 16
          %s774 = scalar_lea.vmem [#allocation6], %s773
          %775 = dma.done %s771, 256
        $region102: #{tpu_custom_call.1} parent=97 // pred_fallthru
          _
      $region98: #{tpu_custom_call.1} parent=5 // pred_fallthru
        _
    $region6: #{tpu_custom_call.1} parent=1 // loop_footer
      %s18 = sadd.s32 1, %s14
    $region7: #{tpu_custom_call.1} parent=1 // loop_footer_branch
      %13 = sbr.rel target = $region3
    $region8: #{tpu_custom_call.1} parent=1 // loop_exit
      _
    %776 = vsyncpa [#allocation7], 1
    %s777 = scalar_lea.sflag [#allocation7], 1
    %778 = vsyncpa %s777, 1

</llo_original>
